<compile_context>
chip_gen: v6e
topology: v6e:2x2x1
jax: 0.10.0
libtpu: 0.0.40
codegen_flags: <defaults>
</compile_context>

<pallas_src>
from typing import List, Sequence

import jax
import jax.numpy as jnp
from jax.experimental import pallas as pl
from jax.experimental.pallas import tpu as pltpu


def _round_up(x: int, m: int) -> int:
    return ((x + m - 1) // m) * m


def _make_fused_embed_kernel(vocab_offsets: Sequence[int]):
    """Builds the kernel with the per-field vocab offsets baked in as constants."""
    voffs = tuple(int(v) for v in vocab_offsets)

    def kernel(idx_ref, tab_ref, out_ref):
        # idx_ref: (TB, F) int32 raw per-field indices for this batch tile.
        # tab_ref: (V_tot, E_tot) f32 block-diagonal table (resident in VMEM).
        # out_ref: (TB, E_tot) f32 lane-dense concatenated output slab.
        TB, F = idx_ref.shape
        V_tot = tab_ref.shape[0]

        ids = idx_ref[...]                                          # (TB, F)
        iota = jax.lax.broadcasted_iota(jnp.int32, (TB, V_tot), 1)  # (TB, V_tot)

        # Multi-hot over the combined vocab: one hit per field, disjoint vocab
        # ranges. F is small & static -> unrolled VPU compares, OR-accumulated
        # in bool and cast to f32 once.
        hits = iota == (ids[:, 0:1] + voffs[0])
        for f in range(1, F):
            hits = hits | (iota == (ids[:, f:f + 1] + voffs[f]))
        multihot = hits.astype(jnp.float32)

        # Single MXU matmul emits the concatenated embeddings for all fields.
        out_ref[...] = jnp.dot(multihot, tab_ref[...],
                               preferred_element_type=jnp.float32)

    return kernel


def fused_embedding_lookup(x: jax.Array, table: jax.Array,
                           vocab_offsets: Sequence[int],
                           *, batch_tile: int = 256) -> jax.Array:
    """All-field embedding lookup: x (B, F) int -> (B, E_tot) f32."""
    B, F = x.shape
    V_tot, E_tot = table.shape

    # Batch tile: multiple of 8 sublanes; pad B up to a multiple of the tile
    # so every grid step sees a full block.
    TB = min(batch_tile, _round_up(B, 8))
    B_pad = _round_up(B, TB)

    x32 = x.astype(jnp.int32)
    if B_pad != B:
        # Pad rows hit index 0 (the zeroed padding row) and are sliced off.
        x32 = jnp.pad(x32, ((0, B_pad - B), (0, 0)))

    kernel = _make_fused_embed_kernel(vocab_offsets)

    out = pl.pallas_call(
        kernel,
        out_shape=jax.ShapeDtypeStruct((B_pad, E_tot), jnp.float32),
        grid=(B_pad // TB,),
        in_specs=[
            # Indices: walk the batch axis; F is the (full-extent) lane axis.
            pl.BlockSpec((TB, F), lambda i: (i, 0)),
            # Combined table: constant block index -> stays resident in VMEM.
            pl.BlockSpec((V_tot, E_tot), lambda i: (0, 0)),
        ],
        out_specs=pl.BlockSpec((TB, E_tot), lambda i: (i, 0)),
        compiler_params=pltpu.CompilerParams(
            dimension_semantics=("parallel",)),
    )(x32, table)

    return out[:B] if B_pad != B else out


class FeaturesEmbedding:
    """JAX/Pallas port of the PyTorch FeaturesEmbedding module."""

    def __init__(self, field_embeds: List[int], embed_sizes: List[int],
                 key: jax.Array):
        assert len(field_embeds) == len(embed_sizes)
        self.tables = []
        keys = jax.random.split(key, max(len(field_embeds), 1))
        for k, (field_size, embed_size) in zip(keys,
                                               zip(field_embeds, embed_sizes)):
            # nn.Embedding default init: N(0, 1); padding_idx=0 row is zeros.
            tab = jax.random.normal(k, (field_size + 1, embed_size),
                                    dtype=jnp.float32)
            tab = tab.at[0, :].set(0.0)
            self.tables.append(tab)

        # Pack all tables once into a block-diagonal combined table so the
        # kernel produces the concatenated output with a single matmul.
        self.num_fields = len(self.tables)
        v_tot = sum(t.shape[0] for t in self.tables)
        e_tot = sum(t.shape[1] for t in self.tables)
        self.e_tot = e_tot
        comb = jnp.zeros((max(v_tot, 1), max(e_tot, 1)), dtype=jnp.float32)
        voffs = []
        voff = eoff = 0
        for tab in self.tables:
            V, E = tab.shape
            comb = comb.at[voff:voff + V, eoff:eoff + E].set(tab)
            voffs.append(voff)
            voff += V
            eoff += E
        self.combined_table = comb
        self.vocab_offsets = tuple(voffs)   # static Python ints, baked into kernel

    def __call__(self, x: jax.Array) -> jax.Array:
        # x: (B, F) int indices
        B = x.shape[0]
        if self.num_fields == 0:
            return jnp.zeros((B, 0), dtype=jnp.float32)
        return fused_embedding_lookup(x, self.combined_table,
                                      self.vocab_offsets)


def _reference_forward(x, tables):
    # Pure-JAX reference (mirrors the PyTorch loop + concat).
    outs = [tab[x[:, i]] for i, tab in enumerate(tables)]
    return jnp.concatenate(outs, axis=-1)


if __name__ == "__main__":
    key = jax.random.PRNGKey(0)
    k_params, k_idx = jax.random.split(key)

    # Small, module-consistent shapes: 3 fields with vocab sizes and embed dims.
    field_embeds = [10, 20, 15]     # table rows = field_size + 1
    embed_sizes = [8, 16, 8]        # output width = 32
    batch = 30                      # not a multiple of the tile -> exercises padding

    model = FeaturesEmbedding(field_embeds, embed_sizes, k_params)

    # Indices in [0, field_size] per field (0 hits the padding row).
    cols = []
    for j, fs in enumerate(field_embeds):
        kj = jax.random.fold_in(k_idx, j)
        cols.append(jax.random.randint(kj, (batch,), 0, fs + 1, dtype=jnp.int32))
    x = jnp.stack(cols, axis=1)     # (B, F) int32

    ref = _reference_forward(x, model.tables)

    # Small batch tile so the demo actually runs a multi-tile grid + padding.
    out = fused_embedding_lookup(x, model.combined_table, model.vocab_offsets,
                                 batch_tile=16)
    out = jax.block_until_ready(out)
    assert out.shape == (batch, sum(embed_sizes))
    assert out.dtype == jnp.float32
    assert jnp.allclose(out, ref, atol=1e-5), "mismatch vs reference"

    # Also check the module-level __call__ path (default tile, single grid step).
    out2 = jax.block_until_ready(model(x))
    assert jnp.allclose(out2, ref, atol=1e-5), "mismatch vs reference (module path)"

    print("KERNEL_OK")
</pallas_src>

<mosaic_0001>
module attributes {stable_mosaic.version = 11 : i64} {
  func.func @kernel(%arg0: i32, %arg1: memref<16x3xi32, #tpu.memory_space<vmem>>, %arg2: memref<48x32xf32, #tpu.memory_space<vmem>>, %arg3: memref<16x32xf32, #tpu.memory_space<vmem>>) attributes {dimension_semantics = [#tpu.dimension_semantics<parallel>], iteration_bounds = array<i64: 2>, scalar_prefetch = 0 : i64, scratch_operands = 0 : i64, tpu.core_type = #tpu.core_type<tc>, window_params = [{transform_indices = @transform_0, window_bounds = array<i64: 16, 3>}, {pipeline_mode = #tpu.pipeline_mode<synchronous>, transform_indices = @transform_1, window_bounds = array<i64: 48, 32>}, {transform_indices = @transform_2, window_bounds = array<i64: 16, 32>}]} {
    %c0 = arith.constant 0 : index
    %c0_0 = arith.constant 0 : index
    %0 = vector.load %arg1[%c0, %c0_0] : memref<16x3xi32, #tpu.memory_space<vmem>>, vector<16x3xi32>
    %1 = tpu.iota {dimensions = array<i32: 1>} : vector<16x48xi32>
    %2 = vector.extract_strided_slice %0 {offsets = [0, 0], sizes = [16, 1], strides = [1, 1]} : vector<16x3xi32> to vector<16x1xi32>
    %c0_i32 = arith.constant 0 : i32
    %3 = vector.broadcast %c0_i32 : i32 to vector<16x1xi32>
    %4 = arith.addi %2, %3 : vector<16x1xi32>
    %5 = vector.broadcast %4 : vector<16x1xi32> to vector<16x48xi32>
    %6 = arith.cmpi eq, %1, %5 : vector<16x48xi32>
    %7 = vector.extract_strided_slice %0 {offsets = [0, 1], sizes = [16, 1], strides = [1, 1]} : vector<16x3xi32> to vector<16x1xi32>
    %c11_i32 = arith.constant 11 : i32
    %8 = vector.broadcast %c11_i32 : i32 to vector<16x1xi32>
    %9 = arith.addi %7, %8 : vector<16x1xi32>
    %10 = vector.broadcast %9 : vector<16x1xi32> to vector<16x48xi32>
    %11 = arith.cmpi eq, %1, %10 : vector<16x48xi32>
    %12 = arith.ori %6, %11 : vector<16x48xi1>
    %13 = vector.extract_strided_slice %0 {offsets = [0, 2], sizes = [16, 1], strides = [1, 1]} : vector<16x3xi32> to vector<16x1xi32>
    %c32_i32 = arith.constant 32 : i32
    %14 = vector.broadcast %c32_i32 : i32 to vector<16x1xi32>
    %15 = arith.addi %13, %14 : vector<16x1xi32>
    %16 = vector.broadcast %15 : vector<16x1xi32> to vector<16x48xi32>
    %17 = arith.cmpi eq, %1, %16 : vector<16x48xi32>
    %18 = arith.ori %12, %17 : vector<16x48xi1>
    %19 = arith.extui %18 : vector<16x48xi1> to vector<16x48xi32>
    %20 = arith.sitofp %19 : vector<16x48xi32> to vector<16x48xf32>
    %c0_1 = arith.constant 0 : index
    %c0_2 = arith.constant 0 : index
    %21 = vector.load %arg2[%c0_1, %c0_2] : memref<48x32xf32, #tpu.memory_space<vmem>>, vector<48x32xf32>
    %cst = arith.constant dense<0.000000e+00> : vector<16x32xf32>
    %22 = tpu.matmul %20, %21, %cst {dimension_numbers = #tpu.dot_dimension_numbers<[1], [0], [0], [1], [0, 0, 1, 1], [], []>} : vector<16x48xf32>, vector<48x32xf32>, vector<16x32xf32> -> vector<16x32xf32>
    %c0_3 = arith.constant 0 : index
    %c0_4 = arith.constant 0 : index
    %23 = vector.load %arg3[%c0_3, %c0_4] : memref<16x32xf32, #tpu.memory_space<vmem>>, vector<16x32xf32>
    tpu.vector_store %arg3[%c0_3, %c0_4], %22 {strides = array<i32>} : memref<16x32xf32, #tpu.memory_space<vmem>>, vector<16x32xf32>,
    return
  }
  func.func @transform_0(%arg0: i32) -> (i32, i32) {
    %c0_i32 = arith.constant 0 : i32
    %c0_i32_0 = arith.constant 0 : i32
    return %arg0, %c0_i32 : i32, i32
  }
  func.func @transform_1(%arg0: i32) -> (i32, i32) {
    %c0_i32 = arith.constant 0 : i32
    %c0_i32_0 = arith.constant 0 : i32
    %c0_i32_1 = arith.constant 0 : i32
    return %c0_i32, %c0_i32_0 : i32, i32
  }
  func.func @transform_2(%arg0: i32) -> (i32, i32) {
    %c0_i32 = arith.constant 0 : i32
    %c0_i32_0 = arith.constant 0 : i32
    return %arg0, %c0_i32 : i32, i32
  }
}

</mosaic_0001>

<llo_original>
// kernel: tpu_custom_call.1
$region0: #{tpu_custom_call.1}
  #allocation0 [shape = 'u32[]', space=smem, size = 0x4, offset = 0x4, fixed_abs, tag = 'smem constant byte address 0x4 - core index']
  #allocation1 [shape = 'u32[144,128]{1,0:T(1,128)}', space=vmem, size = 0x12000, scoped, tag = 'internal scratch']
  %s0 = inlined_call_operand.vmem [shape: s32[32,3], index: 0, kind: input, shape index: {}]
  %s1 = inlined_call_operand.vmem [shape: f32[48,32], index: 1, kind: input, shape index: {}]
  %s2 = inlined_call_operand.hbm [shape: f32[32,32], index: 2, kind: output, shape index: {}]
  %s3 = sld [smem:[#allocation0]]
  $region41: #{tpu_custom_call.1} parent=0
    _
  %s5 = ssub.s32 1, %s3
  %s6 = scalar_select 0, %s5, %s3
  $region1: #{tpu_custom_call.1} parent=0
    #allocation2 [shape = 'u8[16384]{0}', space=vmem, size = 0x4000, scoped, tag = 'output window, operand 0']
    #allocation3 [shape = 's32[2]{0}', space=sflag, size = 0x8, scoped, tag = 'scoped memory for tpu_custom_call.1']
    %7 = vsyncpa [#allocation3], 0
    %s8 = scalar_lea.sflag [#allocation3], 1
    %9 = vsyncpa %s8, 0
    loop: start=0, step=1, limit=4
    $region2: #{tpu_custom_call.1} parent=1 // loop_pre_header
      _
    $region3: #{tpu_custom_call.1} parent=1 // loop_header
      %s11 = sphi 0, %s15
      %p12 = scmp.ge.s32.totalorder %s11, 4
      %s21 = sphi 0, %s23
      %s24 = sphi 0, %s21
      %s25 = sphi 0, %s24
      %s41 = sphi 0, %s25
      %s45 = sphi 0, %s45
      %s47 = sphi 0, %s45
      %s48 = sphi 0, %s47
      %s62 = sphi 0, %s48
      %s68 = sphi 0, %s70
      %s71 = sphi 0, %s68
      %s72 = sphi 0, %s71
      %s88 = sphi 0, %s72
    $region4: #{tpu_custom_call.1} parent=1 // loop_header_branch
      %14 = sbr.rel (%p12) target = $region8
    $region5: #{tpu_custom_call.1} parent=1 // loop_body
      %s16 = ssub.s32 %s11, 1
      %s17 = ssub.s32 %s11, 2
      %s18 = sadd.s32 %s11, 1
      %s19 = ssub.s32 %s11, %s18
      %p20 = scmp.eq.s32.totalorder %s19, 0
      %s22 = sadd.s32 %s21, 1
      %s23 = scalar_select %p20, %s21, %s22
      %p26 = pneg %p20
      %p27 = scmp.eq.s32.totalorder %s11, 1
      %p28 = por %p26, %p27
      %p29 = scmp.ne.s32.totalorder %s21, %s24
      %p30 = scmp.eq.s32.totalorder %s11, 0
      %p31 = por %p29, %p30
      %p32 = scmp.ne.s32.totalorder %s21, %s24
      %p33 = scmp.eq.s32.totalorder %s16, 1
      %p34 = por %p32, %p33
      %p35 = scmp.ne.s32.totalorder %s24, %s25
      %p36 = scmp.eq.s32.totalorder %s16, 0
      %p37 = por %p35, %p36
      %p38 = scmp.ne.s32.totalorder %s24, %s25
      %p39 = scmp.eq.s32.totalorder %s17, 1
      %p40 = por %p38, %p39
      %p42 = scmp.ne.s32.totalorder %s25, %s41
      %p43 = scmp.eq.s32.totalorder %s17, 0
      %p44 = por %p42, %p43
      %s46 = sadd.s32 %s45, 1
      %p49 = scmp.eq.s32.totalorder %s11, 1
      %p50 = scmp.ne.s32.totalorder %s45, %s47
      %p51 = scmp.eq.s32.totalorder %s11, 0
      %p52 = por %p50, %p51
      %p53 = scmp.ne.s32.totalorder %s45, %s47
      %p54 = scmp.eq.s32.totalorder %s16, 1
      %p55 = por %p53, %p54
      %p56 = scmp.ne.s32.totalorder %s47, %s48
      %p57 = scmp.eq.s32.totalorder %s16, 0
      %p58 = por %p56, %p57
      %p59 = scmp.ne.s32.totalorder %s47, %s48
      %p60 = scmp.eq.s32.totalorder %s17, 1
      %p61 = por %p59, %p60
      %p63 = scmp.ne.s32.totalorder %s48, %s62
      %p64 = scmp.eq.s32.totalorder %s17, 0
      %p65 = por %p63, %p64
      %s66 = ssub.s32 %s11, %s18
      %p67 = scmp.eq.s32.totalorder %s66, 0
      %s69 = sadd.s32 %s68, 1
      %s70 = scalar_select %p67, %s68, %s69
      %p73 = pneg %p67
      %p74 = scmp.eq.s32.totalorder %s11, 1
      %p75 = por %p73, %p74
      %p76 = scmp.ne.s32.totalorder %s68, %s71
      %p77 = scmp.eq.s32.totalorder %s11, 0
      %p78 = por %p76, %p77
      %p79 = scmp.ne.s32.totalorder %s68, %s71
      %p80 = scmp.eq.s32.totalorder %s16, 1
      %p81 = por %p79, %p80
      %p82 = scmp.ne.s32.totalorder %s71, %s72
      %p83 = scmp.eq.s32.totalorder %s16, 0
      %p84 = por %p82, %p83
      %p85 = scmp.ne.s32.totalorder %s71, %s72
      %p86 = scmp.eq.s32.totalorder %s17, 1
      %p87 = por %p85, %p86
      %p89 = scmp.ne.s32.totalorder %s72, %s88
      %p90 = scmp.eq.s32.totalorder %s17, 0
      %p91 = por %p89, %p90
      %p92 = scmp.le.s32.totalorder 1, %s11
      %p93 = scmp.lt.s32.totalorder %s11, 3
      %p94 = pnand %p92, %p93
      %p95 = pneg %p94
      // Predicated region
      $region9: #{tpu_custom_call.1} parent=5 // pred_check
        _
      $region10: #{tpu_custom_call.1} parent=5 // pred_check_branch
        %97 = sbr.rel (%p94) target = $region12
      $region11: #{tpu_custom_call.1} parent=5 // pred_region
        %s98 = ssub.s32 %s11, 1
        // Predicated region
        $region13: #{tpu_custom_call.1} parent=11 // pred_check
          %p99 = pneg %p58
        $region14: #{tpu_custom_call.1} parent=11 // pred_check_branch
          %101 = sbr.rel (%p99) target = $region16
        $region15: #{tpu_custom_call.1} parent=11 // pred_region
          _
        $region16: #{tpu_custom_call.1} parent=11 // pred_fallthru
          _
      $region12: #{tpu_custom_call.1} parent=5 // pred_fallthru
        _
      %p102 = scmp.lt.s32.totalorder %s11, 2
      // Predicated region
      $region17: #{tpu_custom_call.1} parent=5 // pred_check
        %p103 = pneg %p102
      $region18: #{tpu_custom_call.1} parent=5 // pred_check_branch
        %105 = sbr.rel (%p103) target = $region20
      $region19: #{tpu_custom_call.1} parent=5 // pred_region
        // Predicated region
        $region21: #{tpu_custom_call.1} parent=19 // pred_check
          %p106 = pneg %p31
        $region22: #{tpu_custom_call.1} parent=19 // pred_check_branch
          %108 = sbr.rel (%p106) target = $region24
        $region23: #{tpu_custom_call.1} parent=19 // pred_region
          %s109 = smul.u32 2, %s11
          %p110 = scmp.lt.s32.totalorder %s109, 3
          %s111 = scalar_select %p110, %s109, 3
          %s112 = smul.addr %s111, 8
          %s113 = scalar_lea.vmem %s0, %s112
          %s114 = smul.u32 2, %s11
        $region24: #{tpu_custom_call.1} parent=19 // pred_fallthru
          _
      $region20: #{tpu_custom_call.1} parent=5 // pred_fallthru
        _
      %p115 = scmp.le.s32.totalorder 1, %s11
      %p116 = scmp.lt.s32.totalorder %s11, 3
      %p117 = pnand %p115, %p116
      %p118 = pneg %p117
      // Predicated region
      $region25: #{tpu_custom_call.1} parent=5 // pred_check
        _
      $region26: #{tpu_custom_call.1} parent=5 // pred_check_branch
        %120 = sbr.rel (%p117) target = $region28
      $region27: #{tpu_custom_call.1} parent=5 // pred_region
        %s121 = ssub.s32 %s11, 1
        %s122 = smul.u32 2, %s16
        %p123 = scmp.lt.s32.totalorder %s122, 3
        %s124 = scalar_select %p123, %s122, 3
        %s125 = smul.addr %s124, 8
        %s126 = scalar_lea.vmem %s0, %s125
        %p127 = pneg %p37
        %p128 = pneg %p34
        %p129 = pneg %p58
        %p130 = pneg %p55
        %p131 = pneg %p84
        %p132 = pneg %p81
        %s133 = sand.u32 %s71, 1
        %s134 = scalar_lea.sflag [#allocation3], %s133
        %s135 = sand.u32 %s71, 1
        %s136 = smul.addr %s135, 16
        %s137 = scalar_lea.vmem [#allocation2], %s136
        %s138 = smul.u32 2, %s16
        %p139 = scmp.lt.s32.totalorder %s138, 3
        %s140 = scalar_select %p139, %s138, 3
        %s141 = smul.addr %s140, 8
        %s142 = scalar_lea.vmem %s0, %s141
        %s143 = smul.u32 2, %s16
        %s144 = smul.u32 2, %s16
        %v145 = vld [vmem:[%s142] sm:$0xff]
        %v146 = vld [vmem:[%s142 + $0x8] sm:$0xff]
        %v147 = vlaneseq
        %v148 = vand.u32 %v147, 127
        %149 = vset.pattern.permute.xlu0 0
        %150 = vperm.xlu0 %149, %v145
        %v151 = vpop.permute.xlu0 %150
        %152 = vset.pattern.permute.xlu0 0
        %153 = vperm.xlu0 %152, %v146
        %v154 = vpop.permute.xlu0 %153
        %vm155 = vcmp.eq.s32.totalorder %v148, %v151
        %vm156 = vcmp.eq.s32.totalorder %v148, %v154
        %v157 = vadd.s32 %v145, 11
        %v158 = vadd.s32 %v146, 11
        %159 = vset.pattern.permute.xlu0 1
        %160 = vperm.xlu0 %159, %v157
        %v161 = vpop.permute.xlu0 %160
        %162 = vset.pattern.permute.xlu0 1
        %163 = vperm.xlu0 %162, %v158
        %v164 = vpop.permute.xlu0 %163
        %vm165 = vcmp.eq.s32.totalorder %v148, %v161
        %vm166 = vcmp.eq.s32.totalorder %v148, %v164
        %vm167 = vmor %vm155, %vm165
        %vm168 = vmor %vm156, %vm166
        %v169 = vadd.s32 %v145, 32
        %v170 = vadd.s32 %v146, 32
        %171 = vset.pattern.permute.xlu0 2
        %172 = vperm.xlu0 %171, %v169
        %v173 = vpop.permute.xlu0 %172
        %174 = vset.pattern.permute.xlu0 2
        %175 = vperm.xlu0 %174, %v170
        %v176 = vpop.permute.xlu0 %175
        %vm177 = vcmp.eq.s32.totalorder %v148, %v173
        %vm178 = vcmp.eq.s32.totalorder %v148, %v176
        %vm179 = vmor %vm167, %vm177
        %vm180 = vmor %vm168, %vm178
        %v181 = vsel %vm179, 1, 0
        %v182 = vsel %vm180, 1, 0
        %v183 = vcvt.s32.f32 %v181
        %v184 = vcvt.s32.f32 %v182
        %v185 = vld [vmem:[%s1] sm:$0xff]
        %v186 = vld [vmem:[%s1 + $0x8] sm:$0xff]
        %v187 = vld [vmem:[%s1 + $0x10] sm:$0xff]
        %v188 = vld [vmem:[%s1 + $0x18] sm:$0xff]
        %v189 = vld [vmem:[%s1 + $0x20] sm:$0xff]
        %v190 = vld [vmem:[%s1 + $0x28] sm:$0xff]
        %vm191 = vcmask 392192
        %v193 = vsel %vm191, %v183, 0
        %v196 = vsel %vm191, %v184, 0
        %198 = vmatprep.subr.mxu0 0.0
        %199 = vmatpush1.msra.mxu0 0.0
        %200 = vmatprep.subr.mxu0 0.0
        %201 = vmatpush1.msra.mxu0 0.0
        %202 = vmatprep.subr.mxu0 0.0
        %203 = vmatpush1.msra.mxu0 0.0
        %204 = vmatprep.subr.mxu0 0.0
        %205 = vmatpush1.msra.mxu0 0.0
        %206 = vmatprep.subr.mxu0 0.0
        %207 = vmatpush1.msra.mxu0 0.0
        %208 = vmatprep.subr.mxu0 0.0
        %209 = vmatpush1.msra.mxu0 0.0
        %210 = vmatprep.subr.mxu0 0.0
        %211 = vmatpush1.msra.mxu0 0.0
        %212 = vmatprep.subr.mxu0 0.0
        %213 = vmatpush1.msra.mxu0 0.0
        %214 = vmatprep.subr.mxu0 0.0
        %215 = vmatpush1.msra.mxu0 0.0
        %216 = vmatprep.subr.mxu0 0.0
        %217 = vmatpush1.msra.mxu0 0.0
        %218 = vmatprep.subr.mxu0 0.0
        %219 = vmatpush1.msra.mxu0 %v190
        %220 = vmatprep.subr.mxu0 0.0
        %221 = vmatpush1.msra.mxu0 %v189
        %222 = vmatprep.subr.mxu0 0.0
        %223 = vmatpush1.msra.mxu0 %v188
        %224 = vmatprep.subr.mxu0 0.0
        %225 = vmatpush1.msra.mxu0 %v187
        %226 = vmatprep.subr.mxu0 0.0
        %227 = vmatpush1.msra.mxu0 %v186
        %228 = vmatprep.subr.mxu0 0.0
        %229 = vmatpush1.msra.mxu0 %v185
        %230 = vmatprep.subr.mxu0 0.0
        %231 = vmatpush2.msra.mxu0 0.0
        %232 = vmatprep.subr.mxu0 0.0
        %233 = vmatpush2.msra.mxu0 0.0
        %234 = vmatprep.subr.mxu0 0.0
        %235 = vmatpush2.msra.mxu0 0.0
        %236 = vmatprep.subr.mxu0 0.0
        %237 = vmatpush2.msra.mxu0 0.0
        %238 = vmatprep.subr.mxu0 0.0
        %239 = vmatpush2.msra.mxu0 0.0
        %240 = vmatprep.subr.mxu0 0.0
        %241 = vmatpush2.msra.mxu0 0.0
        %242 = vmatprep.subr.mxu0 0.0
        %243 = vmatpush2.msra.mxu0 0.0
        %244 = vmatprep.subr.mxu0 0.0
        %245 = vmatpush2.msra.mxu0 0.0
        %246 = vmatprep.subr.mxu0 0.0
        %247 = vmatpush2.msra.mxu0 0.0
        %248 = vmatprep.subr.mxu0 0.0
        %249 = vmatpush2.msra.mxu0 0.0
        %250 = vmatprep.subr.mxu0 0.0
        %251 = vmatpush2.msra.mxu0 0.0
        %252 = vmatprep.subr.mxu0 0.0
        %253 = vmatpush2.msra.mxu0 0.0
        %254 = vmatprep.subr.mxu0 0.0
        %255 = vmatpush2.msra.mxu0 0.0
        %256 = vmatprep.subr.mxu0 0.0
        %257 = vmatpush2.msra.mxu0 0.0
        %258 = vmatprep.subr.mxu0 0.0
        %259 = vmatpush2.msra.mxu0 0.0
        %260 = vmatprep.subr.mxu0 0.0
        %261 = vmatpush2.msra.mxu0 0.0
        %262 = vmatprep.mubr.f32.mxu0 0.0
        %263 = vmatmul.mubr.f32.gmra.mxu0 %v193
        %v264 = vpop.f32.mrf.mxu0
        %v265 = vadd.f32 0.0, %v264
        %v266 = vpop.f32.mrf.mxu0
        %267 = vmatprep.mubr.f32.mxu0 0.0
        %268 = vmatmul.mubr.f32.gmra.mxu0 %v196
        %v269 = vpop.f32.mrf.mxu0
        %v270 = vadd.f32 0.0, %v269
        %v271 = vpop.f32.mrf.mxu0
        %272 = vdwg.mxu0
        %vm273 = vcmask 261120
        %274 = vst.msk [vmem:[%s137] sm:$0xff] %vm273, %v265
        %275 = vst.msk [vmem:[%s137 + $0x8] sm:$0xff] %vm273, %v270
        %s276 = sand.u32 %s71, 1
        %s277 = scalar_lea.sflag [#allocation3], %s276
        %s278 = sand.u32 %s71, 1
        %s279 = smul.addr %s278, 16
        %s280 = scalar_lea.vmem [#allocation2], %s279
        // Predicated region
        $region29: #{tpu_custom_call.1} parent=27 // pred_check
          %p281 = pneg %p81
        $region30: #{tpu_custom_call.1} parent=27 // pred_check_branch
          %283 = sbr.rel (%p281) target = $region32
        $region31: #{tpu_custom_call.1} parent=27 // pred_region
          %s284 = smul.u32 2, %s16
          %s286 = ssub.s32 256, 256
          %287 = vsyncadd %s277, %s286
          %s288 = smul.addr %s284, 128
          %s289 = scalar_lea.hbm %s2, %s288
          %s290 = sshll.u32 %s280, 4
          %s291 = int_to_ptr.vmem [resolvable:$true] %s290
          %296 = dma.vmem_to_hbm [thread:$0]  %s291, 256, %s289, %s277, 128, 128, 8
        $region32: #{tpu_custom_call.1} parent=27 // pred_fallthru
          _
      $region28: #{tpu_custom_call.1} parent=5 // pred_fallthru
        _
      %p297 = scmp.le.s32.totalorder 2, %s11
      // Predicated region
      $region33: #{tpu_custom_call.1} parent=5 // pred_check
        %p298 = pneg %p297
      $region34: #{tpu_custom_call.1} parent=5 // pred_check_branch
        %300 = sbr.rel (%p298) target = $region36
      $region35: #{tpu_custom_call.1} parent=5 // pred_region
        %s301 = ssub.s32 %s11, 2
        // Predicated region
        $region37: #{tpu_custom_call.1} parent=35 // pred_check
          %p302 = pneg %p87
        $region38: #{tpu_custom_call.1} parent=35 // pred_check_branch
          %304 = sbr.rel (%p302) target = $region40
        $region39: #{tpu_custom_call.1} parent=35 // pred_region
          %s305 = sand.u32 %s72, 1
          %s306 = scalar_lea.sflag [#allocation3], %s305
          %s307 = sand.u32 %s72, 1
          %s308 = smul.addr %s307, 16
          %s309 = scalar_lea.vmem [#allocation2], %s308
          %310 = dma.done %s306, 256
        $region40: #{tpu_custom_call.1} parent=35 // pred_fallthru
          _
      $region36: #{tpu_custom_call.1} parent=5 // pred_fallthru
        _
    $region6: #{tpu_custom_call.1} parent=1 // loop_footer
      %s15 = sadd.s32 1, %s11
    $region7: #{tpu_custom_call.1} parent=1 // loop_footer_branch
      %10 = sbr.rel target = $region3
    $region8: #{tpu_custom_call.1} parent=1 // loop_exit
      _
    %311 = vsyncpa [#allocation3], 1
    %s312 = scalar_lea.sflag [#allocation3], 1
    %313 = vsyncpa %s312, 1

</llo_original>
